<compile_context>
chip_gen: v7x
topology: tpu7x:2x2x1
jax: 0.10.0
libtpu: 0.0.40
codegen_flags: <defaults>
</compile_context>

<pallas_src>
import jax
import jax.numpy as jnp
from jax.experimental import pallas as pl
from jax.experimental.pallas import tpu as pltpu


_HIDDEN_DIMS = (64, 32, 32, 16)  # hidden sizes of the PyTorch module


def mlp_kernel(x_ref,
               w1_ref, b1_ref,
               w2_ref, b2_ref,
               w3_ref, b3_ref,
               w45_ref, b45_ref,
               o_ref):
    # x_ref: (in_dim, TB) batch-on-lanes; w_i: (out_i, in_i); b_i: (out_i, 1).
    def dense(w_ref, b_ref, h):
        # Cast the activation to the weight dtype (bf16 path when enabled),
        # accumulate in f32 on the MXU, add the lane-broadcast bias.
        h = h.astype(w_ref.dtype)
        return jnp.dot(w_ref[...], h, preferred_element_type=jnp.float32) + b_ref[...]

    h = x_ref[...]
    h = jnp.maximum(dense(w1_ref, b1_ref, h), 0.0)
    h = jnp.maximum(dense(w2_ref, b2_ref, h), 0.0)
    h = jnp.maximum(dense(w3_ref, b3_ref, h), 0.0)
    # linear4 and linear5 were folded into one affine map on the host (no ReLU between them).
    h = dense(w45_ref, b45_ref, h)
    o_ref[...] = h.astype(o_ref.dtype)


def _pick_batch_tile(batch, block_batch):
    """Lane-axis batch tile: multiple of 128, capped for vreg pressure, and sized
    so the batch grid has >= 2 (even) steps for v7x megacore sharding."""
    tb = max(128, (int(block_batch) // 128) * 128)
    tb = min(tb, 1024)                          # keep (64, tb) f32 intermediate <= 256 KiB
    tb = min(tb, 128 * pl.cdiv(batch, 128))     # never wider than the (rounded) batch
    if batch > 128 and pl.cdiv(batch, tb) < 2:
        # Split the batch evenly over >= 2 grid steps so both v7x TCs get work.
        tb = max(128, 128 * pl.cdiv(pl.cdiv(batch, 2), 128))
    return tb


def mlp_forward(x, params, *, block_batch=1024, use_bf16=False):
    """x: (B, in_dim) f32; params: list of (W (out,in), b (out,)) like nn.Linear."""
    B, in_dim = x.shape
    (w1, b1), (w2, b2), (w3, b3), (w4, b4), (w5, b5) = params
    out_dim = w5.shape[0]

    # Fold linear4/linear5 into one affine layer, in f32 on the host (exact up to
    # f32 reassociation): y = W5 (W4 h + b4) + b5 = (W5 W4) h + (W5 b4 + b5).
    w45 = jnp.dot(w5, w4, preferred_element_type=jnp.float32)        # (out_dim, 32)
    b45 = jnp.dot(w5, b4, preferred_element_type=jnp.float32) + b5   # (out_dim,)

    tb = _pick_batch_tile(B, block_batch)
    grid = (pl.cdiv(B, tb),)

    weight_dtype = jnp.bfloat16 if use_bf16 else jnp.float32

    # Batch on the lane axis; NO host-side zero-pad (Pallas handles the ragged
    # last block, see header comment for the independence invariant).
    x_t = x.T  # (in_dim, B)

    flat = [x_t]
    for w, b in ((w1, b1), (w2, b2), (w3, b3), (w45, b45)):
        flat.append(w.astype(weight_dtype))
        flat.append(b.reshape(-1, 1).astype(jnp.float32))  # (out, 1) lane-broadcast bias

    vmem = pltpu.MemorySpace.VMEM

    def resident_spec(shape):
        # Full-array block with a constant index_map -> fetched once, stays
        # VMEM-resident across all grid steps. (All operands here are 2-D.)
        return pl.BlockSpec(shape, lambda i: (0, 0), memory_space=vmem)

    in_specs = [pl.BlockSpec((in_dim, tb), lambda i: (0, i), memory_space=vmem)]
    for a in flat[1:]:
        in_specs.append(resident_spec(a.shape))
    out_spec = pl.BlockSpec((out_dim, tb), lambda i: (0, i), memory_space=vmem)

    dims = [in_dim, *_HIDDEN_DIMS, out_dim]
    flops = 2 * B * sum(dims[i] * dims[i + 1] for i in range(len(dims) - 1))
    param_bytes = sum(int(a.size) * a.dtype.itemsize for a in flat[1:])
    bytes_accessed = 4 * B * (in_dim + out_dim) + param_bytes

    out_t = pl.pallas_call(
        mlp_kernel,
        out_shape=jax.ShapeDtypeStruct((out_dim, B), jnp.float32),
        grid=grid,
        in_specs=in_specs,
        out_specs=out_spec,
        compiler_params=pltpu.CompilerParams(
            dimension_semantics=("parallel",)),
        cost_estimate=pl.CostEstimate(
            flops=int(flops), transcendentals=0, bytes_accessed=int(bytes_accessed)),
    )(*flat)

    return out_t.T  # back to (B, out_dim)


def init_params(key, input_dim, output_dim):
    """nn.Linear-style init: W (out,in), b (out,), U(-1/sqrt(fan_in), 1/sqrt(fan_in))."""
    dims = [input_dim, *_HIDDEN_DIMS, output_dim]
    params = []
    for i in range(len(dims) - 1):
        fan_in, fan_out = dims[i], dims[i + 1]
        key, kw, kb = jax.random.split(key, 3)
        bound = 1.0 / jnp.sqrt(jnp.float32(fan_in))
        w = jax.random.uniform(kw, (fan_out, fan_in), jnp.float32, -bound, bound)
        b = jax.random.uniform(kb, (fan_out,), jnp.float32, -bound, bound)
        params.append((w, b))
    return params


def reference_forward(x, params):
    h = x
    n = len(params)
    for i, (w, b) in enumerate(params):
        h = h @ w.T + b
        if i < n - 2:          # ReLU after linear1..linear3 only
            h = jnp.maximum(h, 0.0)
    return h


if __name__ == "__main__":
    key = jax.random.PRNGKey(0)

    input_dim = 8    # bike-sharing features after dropping casual/registered/count
    output_dim = 1
    batch = 500      # ragged last block + 2 even grid steps (tb resolves to 256)

    kx, kp = jax.random.split(key)
    x = jax.random.normal(kx, (batch, input_dim), jnp.float32)
    params = init_params(kp, input_dim, output_dim)

    out = jax.block_until_ready(mlp_forward(x, params))   # f32 path (exact semantics)
    ref = reference_forward(x, params)

    assert out.shape == (batch, output_dim)
    assert jnp.allclose(out, ref, atol=2e-5, rtol=2e-5), float(jnp.max(jnp.abs(out - ref)))

    print("KERNEL_OK")
</pallas_src>

<mosaic_0001>
module attributes {stable_mosaic.version = 11 : i64} {
  func.func @mlp_kernel(%arg0: i32, %arg1: memref<8x256xf32, #tpu.memory_space<vmem>>, %arg2: memref<64x8xf32, #tpu.memory_space<vmem>>, %arg3: memref<64x1xf32, #tpu.memory_space<vmem>>, %arg4: memref<32x64xf32, #tpu.memory_space<vmem>>, %arg5: memref<32x1xf32, #tpu.memory_space<vmem>>, %arg6: memref<32x32xf32, #tpu.memory_space<vmem>>, %arg7: memref<32x1xf32, #tpu.memory_space<vmem>>, %arg8: memref<1x32xf32, #tpu.memory_space<vmem>>, %arg9: memref<1x1xf32, #tpu.memory_space<vmem>>, %arg10: memref<1x256xf32, #tpu.memory_space<vmem>>) attributes {dimension_semantics = [#tpu.dimension_semantics<parallel>], iteration_bounds = array<i64: 2>, scalar_prefetch = 0 : i64, scratch_operands = 0 : i64, tpu.core_type = #tpu.core_type<tc>, window_params = [{transform_indices = @transform_0, window_bounds = array<i64: 8, 256>}, {pipeline_mode = #tpu.pipeline_mode<synchronous>, transform_indices = @transform_1, window_bounds = array<i64: 64, 8>}, {pipeline_mode = #tpu.pipeline_mode<synchronous>, transform_indices = @transform_2, window_bounds = array<i64: 64, 1>}, {pipeline_mode = #tpu.pipeline_mode<synchronous>, transform_indices = @transform_3, window_bounds = array<i64: 32, 64>}, {pipeline_mode = #tpu.pipeline_mode<synchronous>, transform_indices = @transform_4, window_bounds = array<i64: 32, 1>}, {pipeline_mode = #tpu.pipeline_mode<synchronous>, transform_indices = @transform_5, window_bounds = array<i64: 32, 32>}, {pipeline_mode = #tpu.pipeline_mode<synchronous>, transform_indices = @transform_6, window_bounds = array<i64: 32, 1>}, {pipeline_mode = #tpu.pipeline_mode<synchronous>, transform_indices = @transform_7, window_bounds = array<i64: 1, 32>}, {pipeline_mode = #tpu.pipeline_mode<synchronous>, transform_indices = @transform_8, window_bounds = array<i64: 1, 1>}, {transform_indices = @transform_9, window_bounds = array<i64: 1, 256>}]} {
    %c0 = arith.constant 0 : index
    %c0_0 = arith.constant 0 : index
    %0 = vector.load %arg1[%c0, %c0_0] : memref<8x256xf32, #tpu.memory_space<vmem>>, vector<8x256xf32>
    %c0_1 = arith.constant 0 : index
    %c0_2 = arith.constant 0 : index
    %1 = vector.load %arg2[%c0_1, %c0_2] : memref<64x8xf32, #tpu.memory_space<vmem>>, vector<64x8xf32>
    %cst = arith.constant dense<0.000000e+00> : vector<64x256xf32>
    %2 = tpu.matmul %1, %0, %cst {dimension_numbers = #tpu.dot_dimension_numbers<[1], [0], [0], [1], [0, 0, 1, 1], [], []>} : vector<64x8xf32>, vector<8x256xf32>, vector<64x256xf32> -> vector<64x256xf32>
    %c0_3 = arith.constant 0 : index
    %c0_4 = arith.constant 0 : index
    %3 = vector.load %arg3[%c0_3, %c0_4] : memref<64x1xf32, #tpu.memory_space<vmem>>, vector<64x1xf32>
    %4 = vector.broadcast %3 : vector<64x1xf32> to vector<64x256xf32>
    %5 = arith.addf %2, %4 : vector<64x256xf32>
    %cst_5 = arith.constant 0.000000e+00 : f32
    %6 = vector.broadcast %cst_5 : f32 to vector<64x256xf32>
    %7 = arith.maximumf %5, %6 : vector<64x256xf32>
    %c0_6 = arith.constant 0 : index
    %c0_7 = arith.constant 0 : index
    %8 = vector.load %arg4[%c0_6, %c0_7] : memref<32x64xf32, #tpu.memory_space<vmem>>, vector<32x64xf32>
    %cst_8 = arith.constant dense<0.000000e+00> : vector<32x256xf32>
    %9 = tpu.matmul %8, %7, %cst_8 {dimension_numbers = #tpu.dot_dimension_numbers<[1], [0], [0], [1], [0, 0, 1, 1], [], []>} : vector<32x64xf32>, vector<64x256xf32>, vector<32x256xf32> -> vector<32x256xf32>
    %c0_9 = arith.constant 0 : index
    %c0_10 = arith.constant 0 : index
    %10 = vector.load %arg5[%c0_9, %c0_10] : memref<32x1xf32, #tpu.memory_space<vmem>>, vector<32x1xf32>
    %11 = vector.broadcast %10 : vector<32x1xf32> to vector<32x256xf32>
    %12 = arith.addf %9, %11 : vector<32x256xf32>
    %cst_11 = arith.constant 0.000000e+00 : f32
    %13 = vector.broadcast %cst_11 : f32 to vector<32x256xf32>
    %14 = arith.maximumf %12, %13 : vector<32x256xf32>
    %c0_12 = arith.constant 0 : index
    %c0_13 = arith.constant 0 : index
    %15 = vector.load %arg6[%c0_12, %c0_13] : memref<32x32xf32, #tpu.memory_space<vmem>>, vector<32x32xf32>
    %cst_14 = arith.constant dense<0.000000e+00> : vector<32x256xf32>
    %16 = tpu.matmul %15, %14, %cst_14 {dimension_numbers = #tpu.dot_dimension_numbers<[1], [0], [0], [1], [0, 0, 1, 1], [], []>} : vector<32x32xf32>, vector<32x256xf32>, vector<32x256xf32> -> vector<32x256xf32>
    %c0_15 = arith.constant 0 : index
    %c0_16 = arith.constant 0 : index
    %17 = vector.load %arg7[%c0_15, %c0_16] : memref<32x1xf32, #tpu.memory_space<vmem>>, vector<32x1xf32>
    %18 = vector.broadcast %17 : vector<32x1xf32> to vector<32x256xf32>
    %19 = arith.addf %16, %18 : vector<32x256xf32>
    %cst_17 = arith.constant 0.000000e+00 : f32
    %20 = vector.broadcast %cst_17 : f32 to vector<32x256xf32>
    %21 = arith.maximumf %19, %20 : vector<32x256xf32>
    %c0_18 = arith.constant 0 : index
    %c0_19 = arith.constant 0 : index
    %22 = vector.load %arg8[%c0_18, %c0_19] : memref<1x32xf32, #tpu.memory_space<vmem>>, vector<1x32xf32>
    %cst_20 = arith.constant dense<0.000000e+00> : vector<1x256xf32>
    %23 = tpu.matmul %22, %21, %cst_20 {dimension_numbers = #tpu.dot_dimension_numbers<[1], [0], [0], [1], [0, 0, 1, 1], [], []>} : vector<1x32xf32>, vector<32x256xf32>, vector<1x256xf32> -> vector<1x256xf32>
    %c0_21 = arith.constant 0 : index
    %c0_22 = arith.constant 0 : index
    %24 = vector.load %arg9[%c0_21, %c0_22] : memref<1x1xf32, #tpu.memory_space<vmem>>, vector<1x1xf32>
    %25 = vector.broadcast %24 : vector<1x1xf32> to vector<1x256xf32>
    %26 = arith.addf %23, %25 : vector<1x256xf32>
    %c0_23 = arith.constant 0 : index
    %c0_24 = arith.constant 0 : index
    %27 = vector.load %arg10[%c0_23, %c0_24] : memref<1x256xf32, #tpu.memory_space<vmem>>, vector<1x256xf32>
    tpu.vector_store %arg10[%c0_23, %c0_24], %26 {strides = array<i32>} : memref<1x256xf32, #tpu.memory_space<vmem>>, vector<1x256xf32>,
    return
  }
  func.func @transform_0(%arg0: i32) -> (i32, i32) {
    %c0_i32 = arith.constant 0 : i32
    %c0_i32_0 = arith.constant 0 : i32
    return %c0_i32, %arg0 : i32, i32
  }
  func.func @transform_1(%arg0: i32) -> (i32, i32) {
    %c0_i32 = arith.constant 0 : i32
    %c0_i32_0 = arith.constant 0 : i32
    %c0_i32_1 = arith.constant 0 : i32
    return %c0_i32, %c0_i32_0 : i32, i32
  }
  func.func @transform_2(%arg0: i32) -> (i32, i32) {
    %c0_i32 = arith.constant 0 : i32
    %c0_i32_0 = arith.constant 0 : i32
    %c0_i32_1 = arith.constant 0 : i32
    return %c0_i32, %c0_i32_0 : i32, i32
  }
  func.func @transform_3(%arg0: i32) -> (i32, i32) {
    %c0_i32 = arith.constant 0 : i32
    %c0_i32_0 = arith.constant 0 : i32
    %c0_i32_1 = arith.constant 0 : i32
    return %c0_i32, %c0_i32_0 : i32, i32
  }
  func.func @transform_4(%arg0: i32) -> (i32, i32) {
    %c0_i32 = arith.constant 0 : i32
    %c0_i32_0 = arith.constant 0 : i32
    %c0_i32_1 = arith.constant 0 : i32
    return %c0_i32, %c0_i32_0 : i32, i32
  }
  func.func @transform_5(%arg0: i32) -> (i32, i32) {
    %c0_i32 = arith.constant 0 : i32
    %c0_i32_0 = arith.constant 0 : i32
    %c0_i32_1 = arith.constant 0 : i32
    return %c0_i32, %c0_i32_0 : i32, i32
  }
  func.func @transform_6(%arg0: i32) -> (i32, i32) {
    %c0_i32 = arith.constant 0 : i32
    %c0_i32_0 = arith.constant 0 : i32
    %c0_i32_1 = arith.constant 0 : i32
    return %c0_i32, %c0_i32_0 : i32, i32
  }
  func.func @transform_7(%arg0: i32) -> (i32, i32) {
    %c0_i32 = arith.constant 0 : i32
    %c0_i32_0 = arith.constant 0 : i32
    %c0_i32_1 = arith.constant 0 : i32
    return %c0_i32, %c0_i32_0 : i32, i32
  }
  func.func @transform_8(%arg0: i32) -> (i32, i32) {
    %c0_i32 = arith.constant 0 : i32
    %c0_i32_0 = arith.constant 0 : i32
    %c0_i32_1 = arith.constant 0 : i32
    return %c0_i32, %c0_i32_0 : i32, i32
  }
  func.func @transform_9(%arg0: i32) -> (i32, i32) {
    %c0_i32 = arith.constant 0 : i32
    %c0_i32_0 = arith.constant 0 : i32
    return %c0_i32, %arg0 : i32, i32
  }
}

</mosaic_0001>

<llo_original>
// kernel: tpu_custom_call.1
$region0: #{tpu_custom_call.1}
  #allocation0 [shape = 'u32[]', space=smem, size = 0x4, offset = 0x4, fixed_abs, tag = 'smem constant byte address 0x4 - core index']
  #allocation1 [shape = 'u32[144,128]{1,0:T(1,128)}', space=vmem, size = 0x12000, scoped, tag = 'internal scratch']
  #allocation2 [shape = 'f32[1,1]{1,0:T(1,128)S(1)}', space=vmem, size = 0x200, scoped, tag = 'scoped memory for tpu_custom_call.1']
  %s0 = inlined_call_operand.vmem [shape: f32[8,500], index: 0, kind: input, shape index: {}]
  %s1 = inlined_call_operand.vmem [shape: f32[64,8], index: 1, kind: input, shape index: {}]
  %s2 = inlined_call_operand.vmem [shape: f32[64,1], index: 2, kind: input, shape index: {}]
  %s3 = inlined_call_operand.vmem [shape: f32[32,64], index: 3, kind: input, shape index: {}]
  %s4 = inlined_call_operand.vmem [shape: f32[32,1], index: 4, kind: input, shape index: {}]
  %s5 = inlined_call_operand.vmem [shape: f32[32,32], index: 5, kind: input, shape index: {}]
  %s6 = inlined_call_operand.vmem [shape: f32[32,1], index: 6, kind: input, shape index: {}]
  %s7 = inlined_call_operand.vmem [shape: f32[1,32], index: 7, kind: input, shape index: {}]
  %s8 = inlined_call_operand.<no memory space> [shape: f32[1,1], index: 8, kind: input, shape index: {}]
  %s9 = inlined_call_operand.hbm [shape: f32[1,500], index: 9, kind: output, shape index: {}]
  %s10 = sld [smem:[#allocation0]]
  $region69: #{tpu_custom_call.1} parent=0
    _
  %s12 = ssub.s32 1, %s10
  %s13 = scalar_select 0, %s12, %s10
  %v14 = vstv %s8
  %15 = vst [vmem:[#allocation2] sm:$0x1] %v14
  $region1: #{tpu_custom_call.1} parent=0
    #allocation3 [shape = 'u8[2048]{0}', space=vmem, size = 0x800, scoped, tag = 'output window, operand 0']
    #allocation4 [shape = 's32[2]{0}', space=sflag, size = 0x8, scoped, tag = 'scoped memory for tpu_custom_call.1']
    %16 = vsyncpa [#allocation4], 0
    %s17 = scalar_lea.sflag [#allocation4], 1
    %18 = vsyncpa %s17, 0
    loop: start=0, step=1, limit=4
    $region2: #{tpu_custom_call.1} parent=1 // loop_pre_header
      _
    $region3: #{tpu_custom_call.1} parent=1 // loop_header
      %s20 = sphi 0, %s24
      %p21 = scmp.ge.s32.totalorder %s20, 4
      %s30 = sphi 0, %s32
      %s33 = sphi 0, %s30
      %s34 = sphi 0, %s33
      %s50 = sphi 0, %s34
      %s54 = sphi 0, %s54
      %s56 = sphi 0, %s54
      %s57 = sphi 0, %s56
      %s71 = sphi 0, %s57
      %s75 = sphi 0, %s75
      %s77 = sphi 0, %s75
      %s78 = sphi 0, %s77
      %s92 = sphi 0, %s78
      %s96 = sphi 0, %s96
      %s98 = sphi 0, %s96
      %s99 = sphi 0, %s98
      %s113 = sphi 0, %s99
      %s117 = sphi 0, %s117
      %s119 = sphi 0, %s117
      %s120 = sphi 0, %s119
      %s134 = sphi 0, %s120
      %s138 = sphi 0, %s138
      %s140 = sphi 0, %s138
      %s141 = sphi 0, %s140
      %s155 = sphi 0, %s141
      %s159 = sphi 0, %s159
      %s161 = sphi 0, %s159
      %s162 = sphi 0, %s161
      %s176 = sphi 0, %s162
      %s180 = sphi 0, %s180
      %s182 = sphi 0, %s180
      %s183 = sphi 0, %s182
      %s197 = sphi 0, %s183
      %s201 = sphi 0, %s201
      %s203 = sphi 0, %s201
      %s204 = sphi 0, %s203
      %s218 = sphi 0, %s204
      %s224 = sphi 0, %s226
      %s227 = sphi 0, %s224
      %s228 = sphi 0, %s227
      %s244 = sphi 0, %s228
    $region4: #{tpu_custom_call.1} parent=1 // loop_header_branch
      %23 = sbr.rel (%p21) target = $region8
    $region5: #{tpu_custom_call.1} parent=1 // loop_body
      %s25 = ssub.s32 %s20, 1
      %s26 = ssub.s32 %s20, 2
      %s27 = sadd.s32 %s20, 1
      %s28 = ssub.s32 %s20, %s27
      %p29 = scmp.eq.s32.totalorder %s28, 0
      %s31 = sadd.s32 %s30, 1
      %s32 = scalar_select %p29, %s30, %s31
      %p35 = pneg %p29
      %p36 = scmp.eq.s32.totalorder %s20, 1
      %p37 = por %p35, %p36
      %p38 = scmp.ne.s32.totalorder %s30, %s33
      %p39 = scmp.eq.s32.totalorder %s20, 0
      %p40 = por %p38, %p39
      %p41 = scmp.ne.s32.totalorder %s30, %s33
      %p42 = scmp.eq.s32.totalorder %s25, 1
      %p43 = por %p41, %p42
      %p44 = scmp.ne.s32.totalorder %s33, %s34
      %p45 = scmp.eq.s32.totalorder %s25, 0
      %p46 = por %p44, %p45
      %p47 = scmp.ne.s32.totalorder %s33, %s34
      %p48 = scmp.eq.s32.totalorder %s26, 1
      %p49 = por %p47, %p48
      %p51 = scmp.ne.s32.totalorder %s34, %s50
      %p52 = scmp.eq.s32.totalorder %s26, 0
      %p53 = por %p51, %p52
      %s55 = sadd.s32 %s54, 1
      %p58 = scmp.eq.s32.totalorder %s20, 1
      %p59 = scmp.ne.s32.totalorder %s54, %s56
      %p60 = scmp.eq.s32.totalorder %s20, 0
      %p61 = por %p59, %p60
      %p62 = scmp.ne.s32.totalorder %s54, %s56
      %p63 = scmp.eq.s32.totalorder %s25, 1
      %p64 = por %p62, %p63
      %p65 = scmp.ne.s32.totalorder %s56, %s57
      %p66 = scmp.eq.s32.totalorder %s25, 0
      %p67 = por %p65, %p66
      %p68 = scmp.ne.s32.totalorder %s56, %s57
      %p69 = scmp.eq.s32.totalorder %s26, 1
      %p70 = por %p68, %p69
      %p72 = scmp.ne.s32.totalorder %s57, %s71
      %p73 = scmp.eq.s32.totalorder %s26, 0
      %p74 = por %p72, %p73
      %s76 = sadd.s32 %s75, 1
      %p79 = scmp.eq.s32.totalorder %s20, 1
      %p80 = scmp.ne.s32.totalorder %s75, %s77
      %p81 = scmp.eq.s32.totalorder %s20, 0
      %p82 = por %p80, %p81
      %p83 = scmp.ne.s32.totalorder %s75, %s77
      %p84 = scmp.eq.s32.totalorder %s25, 1
      %p85 = por %p83, %p84
      %p86 = scmp.ne.s32.totalorder %s77, %s78
      %p87 = scmp.eq.s32.totalorder %s25, 0
      %p88 = por %p86, %p87
      %p89 = scmp.ne.s32.totalorder %s77, %s78
      %p90 = scmp.eq.s32.totalorder %s26, 1
      %p91 = por %p89, %p90
      %p93 = scmp.ne.s32.totalorder %s78, %s92
      %p94 = scmp.eq.s32.totalorder %s26, 0
      %p95 = por %p93, %p94
      %s97 = sadd.s32 %s96, 1
      %p100 = scmp.eq.s32.totalorder %s20, 1
      %p101 = scmp.ne.s32.totalorder %s96, %s98
      %p102 = scmp.eq.s32.totalorder %s20, 0
      %p103 = por %p101, %p102
      %p104 = scmp.ne.s32.totalorder %s96, %s98
      %p105 = scmp.eq.s32.totalorder %s25, 1
      %p106 = por %p104, %p105
      %p107 = scmp.ne.s32.totalorder %s98, %s99
      %p108 = scmp.eq.s32.totalorder %s25, 0
      %p109 = por %p107, %p108
      %p110 = scmp.ne.s32.totalorder %s98, %s99
      %p111 = scmp.eq.s32.totalorder %s26, 1
      %p112 = por %p110, %p111
      %p114 = scmp.ne.s32.totalorder %s99, %s113
      %p115 = scmp.eq.s32.totalorder %s26, 0
      %p116 = por %p114, %p115
      %s118 = sadd.s32 %s117, 1
      %p121 = scmp.eq.s32.totalorder %s20, 1
      %p122 = scmp.ne.s32.totalorder %s117, %s119
      %p123 = scmp.eq.s32.totalorder %s20, 0
      %p124 = por %p122, %p123
      %p125 = scmp.ne.s32.totalorder %s117, %s119
      %p126 = scmp.eq.s32.totalorder %s25, 1
      %p127 = por %p125, %p126
      %p128 = scmp.ne.s32.totalorder %s119, %s120
      %p129 = scmp.eq.s32.totalorder %s25, 0
      %p130 = por %p128, %p129
      %p131 = scmp.ne.s32.totalorder %s119, %s120
      %p132 = scmp.eq.s32.totalorder %s26, 1
      %p133 = por %p131, %p132
      %p135 = scmp.ne.s32.totalorder %s120, %s134
      %p136 = scmp.eq.s32.totalorder %s26, 0
      %p137 = por %p135, %p136
      %s139 = sadd.s32 %s138, 1
      %p142 = scmp.eq.s32.totalorder %s20, 1
      %p143 = scmp.ne.s32.totalorder %s138, %s140
      %p144 = scmp.eq.s32.totalorder %s20, 0
      %p145 = por %p143, %p144
      %p146 = scmp.ne.s32.totalorder %s138, %s140
      %p147 = scmp.eq.s32.totalorder %s25, 1
      %p148 = por %p146, %p147
      %p149 = scmp.ne.s32.totalorder %s140, %s141
      %p150 = scmp.eq.s32.totalorder %s25, 0
      %p151 = por %p149, %p150
      %p152 = scmp.ne.s32.totalorder %s140, %s141
      %p153 = scmp.eq.s32.totalorder %s26, 1
      %p154 = por %p152, %p153
      %p156 = scmp.ne.s32.totalorder %s141, %s155
      %p157 = scmp.eq.s32.totalorder %s26, 0
      %p158 = por %p156, %p157
      %s160 = sadd.s32 %s159, 1
      %p163 = scmp.eq.s32.totalorder %s20, 1
      %p164 = scmp.ne.s32.totalorder %s159, %s161
      %p165 = scmp.eq.s32.totalorder %s20, 0
      %p166 = por %p164, %p165
      %p167 = scmp.ne.s32.totalorder %s159, %s161
      %p168 = scmp.eq.s32.totalorder %s25, 1
      %p169 = por %p167, %p168
      %p170 = scmp.ne.s32.totalorder %s161, %s162
      %p171 = scmp.eq.s32.totalorder %s25, 0
      %p172 = por %p170, %p171
      %p173 = scmp.ne.s32.totalorder %s161, %s162
      %p174 = scmp.eq.s32.totalorder %s26, 1
      %p175 = por %p173, %p174
      %p177 = scmp.ne.s32.totalorder %s162, %s176
      %p178 = scmp.eq.s32.totalorder %s26, 0
      %p179 = por %p177, %p178
      %s181 = sadd.s32 %s180, 1
      %p184 = scmp.eq.s32.totalorder %s20, 1
      %p185 = scmp.ne.s32.totalorder %s180, %s182
      %p186 = scmp.eq.s32.totalorder %s20, 0
      %p187 = por %p185, %p186
      %p188 = scmp.ne.s32.totalorder %s180, %s182
      %p189 = scmp.eq.s32.totalorder %s25, 1
      %p190 = por %p188, %p189
      %p191 = scmp.ne.s32.totalorder %s182, %s183
      %p192 = scmp.eq.s32.totalorder %s25, 0
      %p193 = por %p191, %p192
      %p194 = scmp.ne.s32.totalorder %s182, %s183
      %p195 = scmp.eq.s32.totalorder %s26, 1
      %p196 = por %p194, %p195
      %p198 = scmp.ne.s32.totalorder %s183, %s197
      %p199 = scmp.eq.s32.totalorder %s26, 0
      %p200 = por %p198, %p199
      %s202 = sadd.s32 %s201, 1
      %p205 = scmp.eq.s32.totalorder %s20, 1
      %p206 = scmp.ne.s32.totalorder %s201, %s203
      %p207 = scmp.eq.s32.totalorder %s20, 0
      %p208 = por %p206, %p207
      %p209 = scmp.ne.s32.totalorder %s201, %s203
      %p210 = scmp.eq.s32.totalorder %s25, 1
      %p211 = por %p209, %p210
      %p212 = scmp.ne.s32.totalorder %s203, %s204
      %p213 = scmp.eq.s32.totalorder %s25, 0
      %p214 = por %p212, %p213
      %p215 = scmp.ne.s32.totalorder %s203, %s204
      %p216 = scmp.eq.s32.totalorder %s26, 1
      %p217 = por %p215, %p216
      %p219 = scmp.ne.s32.totalorder %s204, %s218
      %p220 = scmp.eq.s32.totalorder %s26, 0
      %p221 = por %p219, %p220
      %s222 = ssub.s32 %s20, %s27
      %p223 = scmp.eq.s32.totalorder %s222, 0
      %s225 = sadd.s32 %s224, 1
      %s226 = scalar_select %p223, %s224, %s225
      %p229 = pneg %p223
      %p230 = scmp.eq.s32.totalorder %s20, 1
      %p231 = por %p229, %p230
      %p232 = scmp.ne.s32.totalorder %s224, %s227
      %p233 = scmp.eq.s32.totalorder %s20, 0
      %p234 = por %p232, %p233
      %p235 = scmp.ne.s32.totalorder %s224, %s227
      %p236 = scmp.eq.s32.totalorder %s25, 1
      %p237 = por %p235, %p236
      %p238 = scmp.ne.s32.totalorder %s227, %s228
      %p239 = scmp.eq.s32.totalorder %s25, 0
      %p240 = por %p238, %p239
      %p241 = scmp.ne.s32.totalorder %s227, %s228
      %p242 = scmp.eq.s32.totalorder %s26, 1
      %p243 = por %p241, %p242
      %p245 = scmp.ne.s32.totalorder %s228, %s244
      %p246 = scmp.eq.s32.totalorder %s26, 0
      %p247 = por %p245, %p246
      %p248 = scmp.le.s32.totalorder 1, %s20
      %p249 = scmp.lt.s32.totalorder %s20, 3
      %p250 = pnand %p248, %p249
      %p251 = pneg %p250
      // Predicated region
      $region9: #{tpu_custom_call.1} parent=5 // pred_check
        _
      $region10: #{tpu_custom_call.1} parent=5 // pred_check_branch
        %253 = sbr.rel (%p250) target = $region12
      $region11: #{tpu_custom_call.1} parent=5 // pred_region
        %s254 = ssub.s32 %s20, 1
        // Predicated region
        $region13: #{tpu_custom_call.1} parent=11 // pred_check
          %p255 = pneg %p67
        $region14: #{tpu_custom_call.1} parent=11 // pred_check_branch
          %257 = sbr.rel (%p255) target = $region16
        $region15: #{tpu_custom_call.1} parent=11 // pred_region
          _
        $region16: #{tpu_custom_call.1} parent=11 // pred_fallthru
          _
        // Predicated region
        $region17: #{tpu_custom_call.1} parent=11 // pred_check
          %p258 = pneg %p88
        $region18: #{tpu_custom_call.1} parent=11 // pred_check_branch
          %260 = sbr.rel (%p258) target = $region20
        $region19: #{tpu_custom_call.1} parent=11 // pred_region
          _
        $region20: #{tpu_custom_call.1} parent=11 // pred_fallthru
          _
        // Predicated region
        $region21: #{tpu_custom_call.1} parent=11 // pred_check
          %p261 = pneg %p109
        $region22: #{tpu_custom_call.1} parent=11 // pred_check_branch
          %263 = sbr.rel (%p261) target = $region24
        $region23: #{tpu_custom_call.1} parent=11 // pred_region
          _
        $region24: #{tpu_custom_call.1} parent=11 // pred_fallthru
          _
        // Predicated region
        $region25: #{tpu_custom_call.1} parent=11 // pred_check
          %p264 = pneg %p130
        $region26: #{tpu_custom_call.1} parent=11 // pred_check_branch
          %266 = sbr.rel (%p264) target = $region28
        $region27: #{tpu_custom_call.1} parent=11 // pred_region
          _
        $region28: #{tpu_custom_call.1} parent=11 // pred_fallthru
          _
        // Predicated region
        $region29: #{tpu_custom_call.1} parent=11 // pred_check
          %p267 = pneg %p151
        $region30: #{tpu_custom_call.1} parent=11 // pred_check_branch
          %269 = sbr.rel (%p267) target = $region32
        $region31: #{tpu_custom_call.1} parent=11 // pred_region
          _
        $region32: #{tpu_custom_call.1} parent=11 // pred_fallthru
          _
        // Predicated region
        $region33: #{tpu_custom_call.1} parent=11 // pred_check
          %p270 = pneg %p172
        $region34: #{tpu_custom_call.1} parent=11 // pred_check_branch
          %272 = sbr.rel (%p270) target = $region36
        $region35: #{tpu_custom_call.1} parent=11 // pred_region
          _
        $region36: #{tpu_custom_call.1} parent=11 // pred_fallthru
          _
        // Predicated region
        $region37: #{tpu_custom_call.1} parent=11 // pred_check
          %p273 = pneg %p193
        $region38: #{tpu_custom_call.1} parent=11 // pred_check_branch
          %275 = sbr.rel (%p273) target = $region40
        $region39: #{tpu_custom_call.1} parent=11 // pred_region
          _
        $region40: #{tpu_custom_call.1} parent=11 // pred_fallthru
          _
        // Predicated region
        $region41: #{tpu_custom_call.1} parent=11 // pred_check
          %p276 = pneg %p214
        $region42: #{tpu_custom_call.1} parent=11 // pred_check_branch
          %278 = sbr.rel (%p276) target = $region44
        $region43: #{tpu_custom_call.1} parent=11 // pred_region
          _
        $region44: #{tpu_custom_call.1} parent=11 // pred_fallthru
          _
      $region12: #{tpu_custom_call.1} parent=5 // pred_fallthru
        _
      %p279 = scmp.lt.s32.totalorder %s20, 2
      // Predicated region
      $region45: #{tpu_custom_call.1} parent=5 // pred_check
        %p280 = pneg %p279
      $region46: #{tpu_custom_call.1} parent=5 // pred_check_branch
        %282 = sbr.rel (%p280) target = $region48
      $region47: #{tpu_custom_call.1} parent=5 // pred_region
        // Predicated region
        $region49: #{tpu_custom_call.1} parent=47 // pred_check
          %p283 = pneg %p40
        $region50: #{tpu_custom_call.1} parent=47 // pred_check_branch
          %285 = sbr.rel (%p283) target = $region52
        $region51: #{tpu_custom_call.1} parent=47 // pred_region
          %s286 = smul.u32 2, %s20
          %p287 = scmp.lt.s32.totalorder %s286, 3
          %s288 = scalar_select %p287, %s286, 3
          %s289 = smul.addr %s288, 8
          %s290 = scalar_lea.vmem %s0, %s289
          %s291 = smul.u32 2, %s20
        $region52: #{tpu_custom_call.1} parent=47 // pred_fallthru
          _
      $region48: #{tpu_custom_call.1} parent=5 // pred_fallthru
        _
      %p292 = scmp.le.s32.totalorder 1, %s20
      %p293 = scmp.lt.s32.totalorder %s20, 3
      %p294 = pnand %p292, %p293
      %p295 = pneg %p294
      // Predicated region
      $region53: #{tpu_custom_call.1} parent=5 // pred_check
        _
      $region54: #{tpu_custom_call.1} parent=5 // pred_check_branch
        %297 = sbr.rel (%p294) target = $region56
      $region55: #{tpu_custom_call.1} parent=5 // pred_region
        %s298 = ssub.s32 %s20, 1
        %s299 = smul.u32 2, %s25
        %p300 = scmp.lt.s32.totalorder %s299, 3
        %s301 = scalar_select %p300, %s299, 3
        %s302 = smul.addr %s301, 8
        %s303 = scalar_lea.vmem %s0, %s302
        %p304 = pneg %p46
        %p305 = pneg %p43
        %p306 = pneg %p67
        %p307 = pneg %p64
        %p308 = pneg %p88
        %p309 = pneg %p85
        %p310 = pneg %p109
        %p311 = pneg %p106
        %p312 = pneg %p130
        %p313 = pneg %p127
        %p314 = pneg %p151
        %p315 = pneg %p148
        %p316 = pneg %p172
        %p317 = pneg %p169
        %p318 = pneg %p193
        %p319 = pneg %p190
        %p320 = pneg %p214
        %p321 = pneg %p211
        %p322 = pneg %p240
        %p323 = pneg %p237
        %s324 = sand.u32 %s227, 1
        %s325 = scalar_lea.sflag [#allocation4], %s324
        %s326 = sand.u32 %s227, 1
        %s327 = smul.addr %s326, 2
        %s328 = scalar_lea.vmem [#allocation3], %s327
        %s329 = smul.u32 2, %s25
        %p330 = scmp.lt.s32.totalorder %s329, 3
        %s331 = scalar_select %p330, %s329, 3
        %s332 = smul.addr %s331, 8
        %s333 = scalar_lea.vmem %s0, %s332
        %s334 = smul.u32 2, %s25
        %s335 = smul.u32 2, %s25
        %v336 = vld [vmem:[%s333] sm:$0xff]
        %v337 = vld [vmem:[%s333 + $0x8] sm:$0xff]
        %v338 = vld [vmem:[%s1] sm:$0xff]
        %v339 = vld [vmem:[%s1 + $0x8] sm:$0xff]
        %v340 = vld [vmem:[%s1 + $0x10] sm:$0xff]
        %v341 = vld [vmem:[%s1 + $0x18] sm:$0xff]
        %v342 = vld [vmem:[%s1 + $0x20] sm:$0xff]
        %v343 = vld [vmem:[%s1 + $0x28] sm:$0xff]
        %v344 = vld [vmem:[%s1 + $0x30] sm:$0xff]
        %v345 = vld [vmem:[%s1 + $0x38] sm:$0xff]
        %v346 = vld [vmem:[%s2] sm:$0xff]
        %v347 = vld [vmem:[%s2 + $0x8] sm:$0xff]
        %v348 = vld [vmem:[%s2 + $0x10] sm:$0xff]
        %v349 = vld [vmem:[%s2 + $0x18] sm:$0xff]
        %v350 = vld [vmem:[%s2 + $0x20] sm:$0xff]
        %v351 = vld [vmem:[%s2 + $0x28] sm:$0xff]
        %v352 = vld [vmem:[%s2 + $0x30] sm:$0xff]
        %v353 = vld [vmem:[%s2 + $0x38] sm:$0xff]
        %355 = vset.pattern.permute.xlu0 0
        %356 = vperm.xlu0 %355, %v346
        %v357 = vpop.permute.xlu0 %356
        %360 = vset.pattern.permute.xlu0 0
        %361 = vperm.xlu0 %360, %v347
        %v362 = vpop.permute.xlu0 %361
        %365 = vset.pattern.permute.xlu0 0
        %366 = vperm.xlu0 %365, %v348
        %v367 = vpop.permute.xlu0 %366
        %370 = vset.pattern.permute.xlu0 0
        %371 = vperm.xlu0 %370, %v349
        %v372 = vpop.permute.xlu0 %371
        %375 = vset.pattern.permute.xlu0 0
        %376 = vperm.xlu0 %375, %v350
        %v377 = vpop.permute.xlu0 %376
        %380 = vset.pattern.permute.xlu0 0
        %381 = vperm.xlu0 %380, %v351
        %v382 = vpop.permute.xlu0 %381
        %385 = vset.pattern.permute.xlu0 0
        %386 = vperm.xlu0 %385, %v352
        %v387 = vpop.permute.xlu0 %386
        %390 = vset.pattern.permute.xlu0 0
        %391 = vperm.xlu0 %390, %v353
        %v392 = vpop.permute.xlu0 %391
        %vm394 = vcmask 64512
        %v396 = vsel %vm394, %v338, 0
        %v399 = vsel %vm394, %v339, 0
        %v402 = vsel %vm394, %v340, 0
        %v405 = vsel %vm394, %v341, 0
        %v408 = vsel %vm394, %v342, 0
        %v411 = vsel %vm394, %v343, 0
        %v414 = vsel %vm394, %v344, 0
        %v417 = vsel %vm394, %v345, 0
        %419 = vmatprep.subr.mxu0 %v337
        %420 = vmatpush1.msra.mxu0 %v336
        %421 = vmatprep.subr.mxu0 0.0
        %422 = vmatpush1.msra.mxu0 0.0
        %423 = vmatprep.subr.mxu0 0.0
        %424 = vmatpush1.msra.mxu0 0.0
        %425 = vmatprep.subr.mxu0 0.0
        %426 = vmatpush1.msra.mxu0 0.0
        %427 = vmatprep.subr.mxu0 0.0
        %428 = vmatpush1.msra.mxu0 0.0
        %429 = vmatprep.subr.mxu0 0.0
        %430 = vmatpush1.msra.mxu0 0.0
        %431 = vmatprep.subr.mxu0 0.0
        %432 = vmatpush1.msra.mxu0 0.0
        %433 = vmatprep.subr.mxu0 0.0
        %434 = vmatpush1.msra.mxu0 0.0
        %435 = vmatprep.subr.mxu0 0.0
        %436 = vmatpush1.msra.mxu0 0.0
        %437 = vmatprep.subr.mxu0 0.0
        %438 = vmatpush1.msra.mxu0 0.0
        %439 = vmatprep.subr.mxu0 0.0
        %440 = vmatpush1.msra.mxu0 0.0
        %441 = vmatprep.subr.mxu0 0.0
        %442 = vmatpush1.msra.mxu0 0.0
        %443 = vmatprep.subr.mxu0 0.0
        %444 = vmatpush1.msra.mxu0 0.0
        %445 = vmatprep.subr.mxu0 0.0
        %446 = vmatpush1.msra.mxu0 0.0
        %447 = vmatprep.subr.mxu0 0.0
        %448 = vmatpush1.msra.mxu0 0.0
        %449 = vmatprep.subr.mxu0 0.0
        %450 = vmatpush1.msra.mxu0 0.0
        %451 = vmatprep.subr.mxu0 0.0
        %452 = vmatpush1.msra.mxu0 0.0
        %453 = vmatprep.subr.mxu0 0.0
        %454 = vmatpush1.msra.mxu0 0.0
        %455 = vmatprep.subr.mxu0 0.0
        %456 = vmatpush1.msra.mxu0 0.0
        %457 = vmatprep.subr.mxu0 0.0
        %458 = vmatpush1.msra.mxu0 0.0
        %459 = vmatprep.subr.mxu0 0.0
        %460 = vmatpush1.msra.mxu0 0.0
        %461 = vmatprep.subr.mxu0 0.0
        %462 = vmatpush1.msra.mxu0 0.0
        %463 = vmatprep.subr.mxu0 0.0
        %464 = vmatpush1.msra.mxu0 0.0
        %465 = vmatprep.subr.mxu0 0.0
        %466 = vmatpush1.msra.mxu0 0.0
        %467 = vmatprep.subr.mxu0 0.0
        %468 = vmatpush1.msra.mxu0 0.0
        %469 = vmatprep.subr.mxu0 0.0
        %470 = vmatpush1.msra.mxu0 0.0
        %471 = vmatprep.subr.mxu0 0.0
        %472 = vmatpush1.msra.mxu0 0.0
        %473 = vmatprep.subr.mxu0 0.0
        %474 = vmatpush1.msra.mxu0 0.0
        %475 = vmatprep.subr.mxu0 0.0
        %476 = vmatpush1.msra.mxu0 0.0
        %477 = vmatprep.subr.mxu0 0.0
        %478 = vmatpush1.msra.mxu0 0.0
        %479 = vmatprep.subr.mxu0 0.0
        %480 = vmatpush1.msra.mxu0 0.0
        %481 = vmatprep.subr.mxu0 0.0
        %482 = vmatpush1.msra.mxu0 0.0
        %483 = vmatprep.mubr.f32.mxu0 0.0
        %484 = vmatmul.mubr.f32.gmra.mrb[0].mxu0 %v396
        %v485 = vpop.f32.mrb[0].mxu0
        %v486 = vadd.f32 %v357, %v485
        %v487 = vpop.f32.mrb[0].mxu0
        %v488 = vadd.f32 %v357, %v487
        %489 = vmatprep.mubr.f32.mxu0 0.0
        %490 = vmatmul.mubr.f32.gmra.mrb[0].mxu0 %v399
        %v491 = vpop.f32.mrb[0].mxu0
        %v492 = vadd.f32 %v362, %v491
        %v493 = vpop.f32.mrb[0].mxu0
        %v494 = vadd.f32 %v362, %v493
        %495 = vmatprep.mubr.f32.mxu0 0.0
        %496 = vmatmul.mubr.f32.gmra.mrb[0].mxu0 %v402
        %v497 = vpop.f32.mrb[0].mxu0
        %v498 = vadd.f32 %v367, %v497
        %v499 = vpop.f32.mrb[0].mxu0
        %v500 = vadd.f32 %v367, %v499
        %501 = vmatprep.mubr.f32.mxu0 0.0
        %502 = vmatmul.mubr.f32.gmra.mrb[0].mxu0 %v405
        %v503 = vpop.f32.mrb[0].mxu0
        %v504 = vadd.f32 %v372, %v503
        %v505 = vpop.f32.mrb[0].mxu0
        %v506 = vadd.f32 %v372, %v505
        %507 = vmatprep.mubr.f32.mxu0 0.0
        %508 = vmatmul.mubr.f32.gmra.mrb[0].mxu0 %v408
        %v509 = vpop.f32.mrb[0].mxu0
        %v510 = vadd.f32 %v377, %v509
        %v511 = vpop.f32.mrb[0].mxu0
        %v512 = vadd.f32 %v377, %v511
        %513 = vmatprep.mubr.f32.mxu0 0.0
        %514 = vmatmul.mubr.f32.gmra.mrb[0].mxu0 %v411
        %v515 = vpop.f32.mrb[0].mxu0
        %v516 = vadd.f32 %v382, %v515
        %v517 = vpop.f32.mrb[0].mxu0
        %v518 = vadd.f32 %v382, %v517
        %519 = vmatprep.mubr.f32.mxu0 0.0
        %520 = vmatmul.mubr.f32.gmra.mrb[0].mxu0 %v414
        %v521 = vpop.f32.mrb[0].mxu0
        %v522 = vadd.f32 %v387, %v521
        %v523 = vpop.f32.mrb[0].mxu0
        %v524 = vadd.f32 %v387, %v523
        %525 = vmatprep.mubr.f32.mxu0 0.0
        %526 = vmatmul.mubr.f32.gmra.mrb[0].mxu0 %v417
        %v527 = vpop.f32.mrb[0].mxu0
        %v528 = vadd.f32 %v392, %v527
        %v529 = vpop.f32.mrb[0].mxu0
        %v530 = vadd.f32 %v392, %v529
        %531 = vdwg.mxu0
        %v532 = vmax.f32 %v486, 0.0
        %v533 = vmax.f32 %v488, 0.0
        %v534 = vmax.f32 %v492, 0.0
        %v535 = vmax.f32 %v494, 0.0
        %v536 = vmax.f32 %v498, 0.0
        %v537 = vmax.f32 %v500, 0.0
        %v538 = vmax.f32 %v504, 0.0
        %v539 = vmax.f32 %v506, 0.0
        %v540 = vmax.f32 %v510, 0.0
        %v541 = vmax.f32 %v512, 0.0
        %v542 = vmax.f32 %v516, 0.0
        %v543 = vmax.f32 %v518, 0.0
        %v544 = vmax.f32 %v522, 0.0
        %v545 = vmax.f32 %v524, 0.0
        %v546 = vmax.f32 %v528, 0.0
        %v547 = vmax.f32 %v530, 0.0
        %v548 = vld [vmem:[%s3] sm:$0xff]
        %v549 = vld [vmem:[%s3 + $0x8] sm:$0xff]
        %v550 = vld [vmem:[%s3 + $0x10] sm:$0xff]
        %v551 = vld [vmem:[%s3 + $0x18] sm:$0xff]
        %v552 = vld [vmem:[%s4] sm:$0xff]
        %v553 = vld [vmem:[%s4 + $0x8] sm:$0xff]
        %v554 = vld [vmem:[%s4 + $0x10] sm:$0xff]
        %v555 = vld [vmem:[%s4 + $0x18] sm:$0xff]
        %557 = vset.pattern.permute.xlu0 0
        %558 = vperm.xlu0 %557, %v552
        %v559 = vpop.permute.xlu0 %558
        %562 = vset.pattern.permute.xlu0 0
        %563 = vperm.xlu0 %562, %v553
        %v564 = vpop.permute.xlu0 %563
        %567 = vset.pattern.permute.xlu0 0
        %568 = vperm.xlu0 %567, %v554
        %v569 = vpop.permute.xlu0 %568
        %572 = vset.pattern.permute.xlu0 0
        %573 = vperm.xlu0 %572, %v555
        %v574 = vpop.permute.xlu0 %573
        %vm576 = vcmask 523264
        %v578 = vsel %vm576, %v548, 0
        %v581 = vsel %vm576, %v549, 0
        %v584 = vsel %vm576, %v550, 0
        %v587 = vsel %vm576, %v551, 0
        %589 = vmatprep.subr.mxu0 %v533
        %590 = vmatpush1.msra.mxu0 %v532
        %591 = vmatprep.subr.mxu0 %v535
        %592 = vmatpush1.msra.mxu0 %v534
        %593 = vmatprep.subr.mxu0 %v537
        %594 = vmatpush1.msra.mxu0 %v536
        %595 = vmatprep.subr.mxu0 %v539
        %596 = vmatpush1.msra.mxu0 %v538
        %597 = vmatprep.subr.mxu0 %v541
        %598 = vmatpush1.msra.mxu0 %v540
        %599 = vmatprep.subr.mxu0 %v543
        %600 = vmatpush1.msra.mxu0 %v542
        %601 = vmatprep.subr.mxu0 %v545
        %602 = vmatpush1.msra.mxu0 %v544
        %603 = vmatprep.subr.mxu0 %v547
        %604 = vmatpush1.msra.mxu0 %v546
        %605 = vmatprep.subr.mxu0 0.0
        %606 = vmatpush1.msra.mxu0 0.0
        %607 = vmatprep.subr.mxu0 0.0
        %608 = vmatpush1.msra.mxu0 0.0
        %609 = vmatprep.subr.mxu0 0.0
        %610 = vmatpush1.msra.mxu0 0.0
        %611 = vmatprep.subr.mxu0 0.0
        %612 = vmatpush1.msra.mxu0 0.0
        %613 = vmatprep.subr.mxu0 0.0
        %614 = vmatpush1.msra.mxu0 0.0
        %615 = vmatprep.subr.mxu0 0.0
        %616 = vmatpush1.msra.mxu0 0.0
        %617 = vmatprep.subr.mxu0 0.0
        %618 = vmatpush1.msra.mxu0 0.0
        %619 = vmatprep.subr.mxu0 0.0
        %620 = vmatpush1.msra.mxu0 0.0
        %621 = vmatprep.subr.mxu0 0.0
        %622 = vmatpush1.msra.mxu0 0.0
        %623 = vmatprep.subr.mxu0 0.0
        %624 = vmatpush1.msra.mxu0 0.0
        %625 = vmatprep.subr.mxu0 0.0
        %626 = vmatpush1.msra.mxu0 0.0
        %627 = vmatprep.subr.mxu0 0.0
        %628 = vmatpush1.msra.mxu0 0.0
        %629 = vmatprep.subr.mxu0 0.0
        %630 = vmatpush1.msra.mxu0 0.0
        %631 = vmatprep.subr.mxu0 0.0
        %632 = vmatpush1.msra.mxu0 0.0
        %633 = vmatprep.subr.mxu0 0.0
        %634 = vmatpush1.msra.mxu0 0.0
        %635 = vmatprep.subr.mxu0 0.0
        %636 = vmatpush1.msra.mxu0 0.0
        %637 = vmatprep.subr.mxu0 0.0
        %638 = vmatpush1.msra.mxu0 0.0
        %639 = vmatprep.subr.mxu0 0.0
        %640 = vmatpush1.msra.mxu0 0.0
        %641 = vmatprep.subr.mxu0 0.0
        %642 = vmatpush1.msra.mxu0 0.0
        %643 = vmatprep.subr.mxu0 0.0
        %644 = vmatpush1.msra.mxu0 0.0
        %645 = vmatprep.subr.mxu0 0.0
        %646 = vmatpush1.msra.mxu0 0.0
        %647 = vmatprep.subr.mxu0 0.0
        %648 = vmatpush1.msra.mxu0 0.0
        %649 = vmatprep.subr.mxu0 0.0
        %650 = vmatpush1.msra.mxu0 0.0
        %651 = vmatprep.subr.mxu0 0.0
        %652 = vmatpush1.msra.mxu0 0.0
        %653 = vmatprep.mubr.f32.mxu0 0.0
        %654 = vmatmul.mubr.f32.gmra.mrb[0].mxu0 %v578
        %v655 = vpop.f32.mrb[0].mxu0
        %v656 = vadd.f32 %v559, %v655
        %v657 = vpop.f32.mrb[0].mxu0
        %v658 = vadd.f32 %v559, %v657
        %659 = vmatprep.mubr.f32.mxu0 0.0
        %660 = vmatmul.mubr.f32.gmra.mrb[0].mxu0 %v581
        %v661 = vpop.f32.mrb[0].mxu0
        %v662 = vadd.f32 %v564, %v661
        %v663 = vpop.f32.mrb[0].mxu0
        %v664 = vadd.f32 %v564, %v663
        %665 = vmatprep.mubr.f32.mxu0 0.0
        %666 = vmatmul.mubr.f32.gmra.mrb[0].mxu0 %v584
        %v667 = vpop.f32.mrb[0].mxu0
        %v668 = vadd.f32 %v569, %v667
        %v669 = vpop.f32.mrb[0].mxu0
        %v670 = vadd.f32 %v569, %v669
        %671 = vmatprep.mubr.f32.mxu0 0.0
        %672 = vmatmul.mubr.f32.gmra.mrb[0].mxu0 %v587
        %v673 = vpop.f32.mrb[0].mxu0
        %v674 = vadd.f32 %v574, %v673
        %v675 = vpop.f32.mrb[0].mxu0
        %v676 = vadd.f32 %v574, %v675
        %677 = vdwg.mxu0
        %v678 = vmax.f32 %v656, 0.0
        %v679 = vmax.f32 %v658, 0.0
        %v680 = vmax.f32 %v662, 0.0
        %v681 = vmax.f32 %v664, 0.0
        %v682 = vmax.f32 %v668, 0.0
        %v683 = vmax.f32 %v670, 0.0
        %v684 = vmax.f32 %v674, 0.0
        %v685 = vmax.f32 %v676, 0.0
        %v686 = vld [vmem:[%s5] sm:$0xff]
        %v687 = vld [vmem:[%s5 + $0x8] sm:$0xff]
        %v688 = vld [vmem:[%s5 + $0x10] sm:$0xff]
        %v689 = vld [vmem:[%s5 + $0x18] sm:$0xff]
        %v690 = vld [vmem:[%s6] sm:$0xff]
        %v691 = vld [vmem:[%s6 + $0x8] sm:$0xff]
        %v692 = vld [vmem:[%s6 + $0x10] sm:$0xff]
        %v693 = vld [vmem:[%s6 + $0x18] sm:$0xff]
        %695 = vset.pattern.permute.xlu0 0
        %696 = vperm.xlu0 %695, %v690
        %v697 = vpop.permute.xlu0 %696
        %700 = vset.pattern.permute.xlu0 0
        %701 = vperm.xlu0 %700, %v691
        %v702 = vpop.permute.xlu0 %701
        %705 = vset.pattern.permute.xlu0 0
        %706 = vperm.xlu0 %705, %v692
        %v707 = vpop.permute.xlu0 %706
        %710 = vset.pattern.permute.xlu0 0
        %711 = vperm.xlu0 %710, %v693
        %v712 = vpop.permute.xlu0 %711
        %vm714 = vcmask 261120
        %v716 = vsel %vm714, %v686, 0
        %v719 = vsel %vm714, %v687, 0
        %v722 = vsel %vm714, %v688, 0
        %v725 = vsel %vm714, %v689, 0
        %727 = vmatprep.subr.mxu0 %v679
        %728 = vmatpush1.msra.mxu0 %v678
        %729 = vmatprep.subr.mxu0 %v681
        %730 = vmatpush1.msra.mxu0 %v680
        %731 = vmatprep.subr.mxu0 %v683
        %732 = vmatpush1.msra.mxu0 %v682
        %733 = vmatprep.subr.mxu0 %v685
        %734 = vmatpush1.msra.mxu0 %v684
        %735 = vmatprep.subr.mxu0 0.0
        %736 = vmatpush1.msra.mxu0 0.0
        %737 = vmatprep.subr.mxu0 0.0
        %738 = vmatpush1.msra.mxu0 0.0
        %739 = vmatprep.subr.mxu0 0.0
        %740 = vmatpush1.msra.mxu0 0.0
        %741 = vmatprep.subr.mxu0 0.0
        %742 = vmatpush1.msra.mxu0 0.0
        %743 = vmatprep.subr.mxu0 0.0
        %744 = vmatpush1.msra.mxu0 0.0
        %745 = vmatprep.subr.mxu0 0.0
        %746 = vmatpush1.msra.mxu0 0.0
        %747 = vmatprep.subr.mxu0 0.0
        %748 = vmatpush1.msra.mxu0 0.0
        %749 = vmatprep.subr.mxu0 0.0
        %750 = vmatpush1.msra.mxu0 0.0
        %751 = vmatprep.subr.mxu0 0.0
        %752 = vmatpush1.msra.mxu0 0.0
        %753 = vmatprep.subr.mxu0 0.0
        %754 = vmatpush1.msra.mxu0 0.0
        %755 = vmatprep.subr.mxu0 0.0
        %756 = vmatpush1.msra.mxu0 0.0
        %757 = vmatprep.subr.mxu0 0.0
        %758 = vmatpush1.msra.mxu0 0.0
        %759 = vmatprep.subr.mxu0 0.0
        %760 = vmatpush1.msra.mxu0 0.0
        %761 = vmatprep.subr.mxu0 0.0
        %762 = vmatpush1.msra.mxu0 0.0
        %763 = vmatprep.subr.mxu0 0.0
        %764 = vmatpush1.msra.mxu0 0.0
        %765 = vmatprep.subr.mxu0 0.0
        %766 = vmatpush1.msra.mxu0 0.0
        %767 = vmatprep.subr.mxu0 0.0
        %768 = vmatpush1.msra.mxu0 0.0
        %769 = vmatprep.subr.mxu0 0.0
        %770 = vmatpush1.msra.mxu0 0.0
        %771 = vmatprep.subr.mxu0 0.0
        %772 = vmatpush1.msra.mxu0 0.0
        %773 = vmatprep.subr.mxu0 0.0
        %774 = vmatpush1.msra.mxu0 0.0
        %775 = vmatprep.subr.mxu0 0.0
        %776 = vmatpush1.msra.mxu0 0.0
        %777 = vmatprep.subr.mxu0 0.0
        %778 = vmatpush1.msra.mxu0 0.0
        %779 = vmatprep.subr.mxu0 0.0
        %780 = vmatpush1.msra.mxu0 0.0
        %781 = vmatprep.subr.mxu0 0.0
        %782 = vmatpush1.msra.mxu0 0.0
        %783 = vmatprep.subr.mxu0 0.0
        %784 = vmatpush1.msra.mxu0 0.0
        %785 = vmatprep.subr.mxu0 0.0
        %786 = vmatpush1.msra.mxu0 0.0
        %787 = vmatprep.subr.mxu0 0.0
        %788 = vmatpush1.msra.mxu0 0.0
        %789 = vmatprep.subr.mxu0 0.0
        %790 = vmatpush1.msra.mxu0 0.0
        %791 = vmatprep.mubr.f32.mxu0 0.0
        %792 = vmatmul.mubr.f32.gmra.mrb[0].mxu0 %v716
        %v793 = vpop.f32.mrb[0].mxu0
        %v794 = vadd.f32 %v697, %v793
        %v795 = vpop.f32.mrb[0].mxu0
        %v796 = vadd.f32 %v697, %v795
        %797 = vmatprep.mubr.f32.mxu0 0.0
        %798 = vmatmul.mubr.f32.gmra.mrb[0].mxu0 %v719
        %v799 = vpop.f32.mrb[0].mxu0
        %v800 = vadd.f32 %v702, %v799
        %v801 = vpop.f32.mrb[0].mxu0
        %v802 = vadd.f32 %v702, %v801
        %803 = vmatprep.mubr.f32.mxu0 0.0
        %804 = vmatmul.mubr.f32.gmra.mrb[0].mxu0 %v722
        %v805 = vpop.f32.mrb[0].mxu0
        %v806 = vadd.f32 %v707, %v805
        %v807 = vpop.f32.mrb[0].mxu0
        %v808 = vadd.f32 %v707, %v807
        %809 = vmatprep.mubr.f32.mxu0 0.0
        %810 = vmatmul.mubr.f32.gmra.mrb[0].mxu0 %v725
        %v811 = vpop.f32.mrb[0].mxu0
        %v812 = vadd.f32 %v712, %v811
        %v813 = vpop.f32.mrb[0].mxu0
        %v814 = vadd.f32 %v712, %v813
        %815 = vdwg.mxu0
        %v816 = vmax.f32 %v794, 0.0
        %v817 = vmax.f32 %v796, 0.0
        %v818 = vmax.f32 %v800, 0.0
        %v819 = vmax.f32 %v802, 0.0
        %v820 = vmax.f32 %v806, 0.0
        %v821 = vmax.f32 %v808, 0.0
        %v822 = vmax.f32 %v812, 0.0
        %v823 = vmax.f32 %v814, 0.0
        %v824 = vld [vmem:[%s7] sm:$0x1]
        %v825 = vld [vmem:[#allocation2] sm:$0x1]
        %827 = vset.pattern.permute.xlu0 0
        %828 = vperm.xlu0 %827, %v825
        %v829 = vpop.permute.xlu0 %828
        %v831 = vlaneseq
        %v832 = vshrl.u32 %v831, 7
        %v833 = vsub.s32 0, %v832
        %v834 = vrot.slane %v829, %v833
        %v836 = vsel %vm714, %v824, 0
        %838 = vmatprep.subr.mxu0 %v817
        %839 = vmatpush1.msra.mxu0 %v816
        %840 = vmatprep.subr.mxu0 %v819
        %841 = vmatpush1.msra.mxu0 %v818
        %842 = vmatprep.subr.mxu0 %v821
        %843 = vmatpush1.msra.mxu0 %v820
        %844 = vmatprep.subr.mxu0 %v823
        %845 = vmatpush1.msra.mxu0 %v822
        %846 = vmatprep.subr.mxu0 0.0
        %847 = vmatpush1.msra.mxu0 0.0
        %848 = vmatprep.subr.mxu0 0.0
        %849 = vmatpush1.msra.mxu0 0.0
        %850 = vmatprep.subr.mxu0 0.0
        %851 = vmatpush1.msra.mxu0 0.0
        %852 = vmatprep.subr.mxu0 0.0
        %853 = vmatpush1.msra.mxu0 0.0
        %854 = vmatprep.subr.mxu0 0.0
        %855 = vmatpush1.msra.mxu0 0.0
        %856 = vmatprep.subr.mxu0 0.0
        %857 = vmatpush1.msra.mxu0 0.0
        %858 = vmatprep.subr.mxu0 0.0
        %859 = vmatpush1.msra.mxu0 0.0
        %860 = vmatprep.subr.mxu0 0.0
        %861 = vmatpush1.msra.mxu0 0.0
        %862 = vmatprep.subr.mxu0 0.0
        %863 = vmatpush1.msra.mxu0 0.0
        %864 = vmatprep.subr.mxu0 0.0
        %865 = vmatpush1.msra.mxu0 0.0
        %866 = vmatprep.subr.mxu0 0.0
        %867 = vmatpush1.msra.mxu0 0.0
        %868 = vmatprep.subr.mxu0 0.0
        %869 = vmatpush1.msra.mxu0 0.0
        %870 = vmatprep.subr.mxu0 0.0
        %871 = vmatpush1.msra.mxu0 0.0
        %872 = vmatprep.subr.mxu0 0.0
        %873 = vmatpush1.msra.mxu0 0.0
        %874 = vmatprep.subr.mxu0 0.0
        %875 = vmatpush1.msra.mxu0 0.0
        %876 = vmatprep.subr.mxu0 0.0
        %877 = vmatpush1.msra.mxu0 0.0
        %878 = vmatprep.subr.mxu0 0.0
        %879 = vmatpush1.msra.mxu0 0.0
        %880 = vmatprep.subr.mxu0 0.0
        %881 = vmatpush1.msra.mxu0 0.0
        %882 = vmatprep.subr.mxu0 0.0
        %883 = vmatpush1.msra.mxu0 0.0
        %884 = vmatprep.subr.mxu0 0.0
        %885 = vmatpush1.msra.mxu0 0.0
        %886 = vmatprep.subr.mxu0 0.0
        %887 = vmatpush1.msra.mxu0 0.0
        %888 = vmatprep.subr.mxu0 0.0
        %889 = vmatpush1.msra.mxu0 0.0
        %890 = vmatprep.subr.mxu0 0.0
        %891 = vmatpush1.msra.mxu0 0.0
        %892 = vmatprep.subr.mxu0 0.0
        %893 = vmatpush1.msra.mxu0 0.0
        %894 = vmatprep.subr.mxu0 0.0
        %895 = vmatpush1.msra.mxu0 0.0
        %896 = vmatprep.subr.mxu0 0.0
        %897 = vmatpush1.msra.mxu0 0.0
        %898 = vmatprep.subr.mxu0 0.0
        %899 = vmatpush1.msra.mxu0 0.0
        %900 = vmatprep.subr.mxu0 0.0
        %901 = vmatpush1.msra.mxu0 0.0
        %902 = vmatprep.mubr.f32.mxu0 0.0
        %903 = vmatmul.mubr.f32.gmra.mrb[0].mxu0 %v836
        %v904 = vpop.f32.mrb[0].mxu0
        %v905 = vadd.f32 %v834, %v904
        %v906 = vpop.f32.mrb[0].mxu0
        %v907 = vadd.f32 %v834, %v906
        %908 = vdwg.mxu0
        %v911 = vcombine.low %v905, %v907
        %v913 = vunpack.c.l.s4 1966171168
        %v914 = vunpack.c.0.s8 %v913
        %v915 = vlaneseq
        %v916 = vshrl.u32 %v915, 7
        %v917 = vsub.s32 %v914, %v916
        %v918 = vrot.slane %v911, %v917
        %v920 = vunpack.c.l.s4 1966171168
        %v921 = vunpack.c.0.s8 %v920
        %v922 = vlaneseq
        %v923 = vshrl.u32 %v922, 7
        %v924 = vsub.s32 %v921, %v923
        %v925 = vrot.slane %v918, %v924
        %v927 = vlaneseq
        %vm928 = vcmp.ge.s32.totalorder %v927, 0
        %vm929 = vcmp.lt.s32.totalorder %v927, 256
        %vm930 = vmand %vm928, %vm929
        %931 = vst.msk [vmem:[%s328] sm:$0x3] %vm930, %v925
        %s932 = sand.u32 %s227, 1
        %s933 = scalar_lea.sflag [#allocation4], %s932
        %s934 = sand.u32 %s227, 1
        %s935 = smul.addr %s934, 2
        %s936 = scalar_lea.vmem [#allocation3], %s935
        // Predicated region
        $region57: #{tpu_custom_call.1} parent=55 // pred_check
          %p937 = pneg %p237
        $region58: #{tpu_custom_call.1} parent=55 // pred_check_branch
          %939 = sbr.rel (%p937) target = $region60
        $region59: #{tpu_custom_call.1} parent=55 // pred_region
          %s940 = smul.u32 2, %s25
          %s942 = ssub.s32 32, 32
          %943 = vsyncadd %s933, %s942
          %s944 = smul.addr %s940, 16
          %s945 = scalar_lea.hbm %s9, %s944
          %s947 = sshll.u32 %s936, 4
          %s948 = int_to_ptr.vmem [resolvable:$true] %s947
          %950 = dma.vmem_to_hbm [thread:$0]  %s948, 32, %s945, %s933
        $region60: #{tpu_custom_call.1} parent=55 // pred_fallthru
          _
      $region56: #{tpu_custom_call.1} parent=5 // pred_fallthru
        _
      %p951 = scmp.le.s32.totalorder 2, %s20
      // Predicated region
      $region61: #{tpu_custom_call.1} parent=5 // pred_check
        %p952 = pneg %p951
      $region62: #{tpu_custom_call.1} parent=5 // pred_check_branch
        %954 = sbr.rel (%p952) target = $region64
      $region63: #{tpu_custom_call.1} parent=5 // pred_region
        %s955 = ssub.s32 %s20, 2
        // Predicated region
        $region65: #{tpu_custom_call.1} parent=63 // pred_check
          %p956 = pneg %p243
        $region66: #{tpu_custom_call.1} parent=63 // pred_check_branch
          %958 = sbr.rel (%p956) target = $region68
        $region67: #{tpu_custom_call.1} parent=63 // pred_region
          %s959 = sand.u32 %s228, 1
          %s960 = scalar_lea.sflag [#allocation4], %s959
          %s961 = sand.u32 %s228, 1
          %s962 = smul.addr %s961, 2
          %s963 = scalar_lea.vmem [#allocation3], %s962
          %964 = dma.done %s960, 32
        $region68: #{tpu_custom_call.1} parent=63 // pred_fallthru
          _
      $region64: #{tpu_custom_call.1} parent=5 // pred_fallthru
        _
    $region6: #{tpu_custom_call.1} parent=1 // loop_footer
      %s24 = sadd.s32 1, %s20
    $region7: #{tpu_custom_call.1} parent=1 // loop_footer_branch
      %19 = sbr.rel target = $region3
    $region8: #{tpu_custom_call.1} parent=1 // loop_exit
      _
    %965 = vsyncpa [#allocation4], 1
    %s966 = scalar_lea.sflag [#allocation4], 1
    %967 = vsyncpa %s966, 1

</llo_original>
